<compile_context>
chip_gen: v7x
topology: tpu7x:2x2x1
jax: 0.10.0
libtpu: 0.0.40
codegen_flags: <defaults>
</compile_context>

<pallas_src>
import functools

import jax
import jax.numpy as jnp
from jax import lax
from jax.experimental import pallas as pl
from jax.experimental.pallas import tpu as pltpu


def _conv_dw_kernel(x_ref, wdw_ref, b1_ref, wbig_ref, b2_ref, out_ref,
                    pad_ref, yflat_ref, *, h, w):
    """Fused depthwise-separable block for one batch tile (all images of the tile).

    x_ref    : (R_in,  H*W)            f32  flat NCHW rows, R_in  = bt*Cin
    wdw_ref  : (R_in,  9)              f32  per-(image,channel) dw taps, BN1 scale folded
    b1_ref   : (R_in,  1)              f32  BN1 bias per row
    wbig_ref : (R_out, R_in)           f32  kron(I_bt, wpw*s2) block-diag pointwise weight
    b2_ref   : (R_out, 1)              f32  BN2 bias per row, R_out = bt*Cout
    out_ref  : (R_out, H*W)            f32  flat NCHW output rows (lane-dense store)
    pad_ref  : (R_in, (H+2)*(W+2))     f32  VMEM scratch: zero-padded flat planes
    yflat_ref: (R_in,  H*W)            f32  VMEM scratch: compacted dw output
    """
    wp = w + 2
    nflat = (h - 1) * wp + w          # covers every valid output pixel in padded-flat coords

    # ---- in-kernel halo: zero the padded scratch, scatter the H image rows into it ----
    pad_ref[...] = jnp.zeros_like(pad_ref)
    xv = x_ref[...]
    for hh in range(h):
        dst = (hh + 1) * wp + 1
        pad_ref[:, dst:dst + w] = xv[:, hh * w:(hh + 1) * w]
    padded = pad_ref[...]                                  # (R_in, (H+2)*(W+2))

    # ---- depthwise 3x3 (stride 1): 9 lane-shifted flat windows ----
    # 3 independent partial accumulators (one per dy) break the serial FMA chain;
    # the dx/dy shifts are static lane slices of the padded slab.
    wdw = wdw_ref[...]                                     # (R_in, 9)
    parts = []
    for dy in range(3):
        part = None
        for dx in range(3):
            off = dy * wp + dx
            tap = padded[:, off:off + nflat]               # (R_in, nflat) lane-dense
            term = tap * wdw[:, 3 * dy + dx:3 * dy + dx + 1]
            part = term if part is None else part + term
        parts.append(part)
    acc = (parts[0] + parts[1]) + parts[2]

    # ---- compact stride-(W+2) rows to lane-dense (R_in, H*W) (drop 2 junk cols/row) ----
    for hh in range(h):
        yflat_ref[:, hh * w:(hh + 1) * w] = acc[:, hh * wp:hh * wp + w]

    # ---- BN1 bias (scale already folded into taps) + LeakyReLU(0.01) ----
    y = yflat_ref[...] + b1_ref[...]
    y = jnp.where(y > 0, y, 0.01 * y)

    # ---- pointwise 1x1 conv + BN2 scale: contract the channel (row) axis with a
    #      block-diagonal-over-batch matmul; result is already flat-NCHW ----
    z = jnp.dot(wbig_ref[...], y, preferred_element_type=jnp.float32)

    # ---- BN2 bias + LeakyReLU(0.1) ----
    z = z + b2_ref[...]
    z = jnp.where(z > 0, z, 0.1 * z)
    out_ref[...] = z.astype(out_ref.dtype)


@jax.jit
def conv_dw_forward(x_nchw, w_dw, w_pw, bn1, bn2):
    """x_nchw: (N, Cin, H, W); w_dw: (Cin, 1, 3, 3); w_pw: (Cout, Cin, 1, 1).

    bn1/bn2: dicts of per-channel (gamma, beta, mean, var), eval-mode BN.
    """
    eps = 1e-5
    N, Cin, H, W = x_nchw.shape
    Cout = w_pw.shape[0]

    # ---- fold eval-mode BN into conv weights / per-channel biases (tiny, plain JAX) ----
    s1 = bn1["gamma"] / jnp.sqrt(bn1["var"] + eps)
    b1 = bn1["beta"] - bn1["mean"] * s1
    s2 = bn2["gamma"] / jnp.sqrt(bn2["var"] + eps)
    b2 = bn2["beta"] - bn2["mean"] * s2

    wdw = (w_dw[:, 0].reshape(Cin, 9) * s1[:, None]).astype(jnp.float32)   # (Cin, 9)
    wpw = (w_pw[:, :, 0, 0] * s2[:, None]).astype(jnp.float32)             # (Cout, Cin)

    # ---- batch tiling: one grid step per batch chunk. Target >=128 pointwise output
    #      rows per step when the batch allows it; tiny demo batch -> a single step. ----
    target_bt = max(1, -(-128 // Cout))
    bt = next(d for d in range(min(N, target_bt), 0, -1) if N % d == 0)
    nb = N // bt
    if nb > 1 and ((bt * Cin) % 8 or (bt * Cout) % 8):
        bt, nb = N, 1   # keep (8,128) BlockSpec tiling rules rather than split awkwardly

    # ---- per-row (image-in-tile, channel) constants (all tiny, resident in VMEM) ----
    wdw_rows = jnp.tile(wdw, (bt, 1))                                      # (bt*Cin, 9)
    b1_col = jnp.tile(b1.astype(jnp.float32), bt)[:, None]                 # (bt*Cin, 1)
    wbig = jnp.kron(jnp.eye(bt, dtype=jnp.float32), wpw)                   # (bt*Cout, bt*Cin)
    b2_col = jnp.tile(b2.astype(jnp.float32), bt)[:, None]                 # (bt*Cout, 1)

    # Free metadata-only reshape of the contiguous NCHW input (no HBM relayout pass).
    x_flat = x_nchw.reshape(N * Cin, H * W).astype(jnp.float32)

    kernel = functools.partial(_conv_dw_kernel, h=H, w=W)

    flops = 2 * N * H * W * Cin * (9 + Cout)
    bytes_accessed = 4 * (N * Cin * H * W + N * Cout * H * W
                          + nb * (bt * Cin * 10 + bt * bt * Cin * Cout + bt * Cout))

    out_flat = pl.pallas_call(
        kernel,
        out_shape=jax.ShapeDtypeStruct((N * Cout, H * W), jnp.float32),
        grid=(nb,),
        in_specs=[
            pl.BlockSpec((bt * Cin, H * W), lambda b: (b, 0)),       # activations
            pl.BlockSpec((bt * Cin, 9), lambda b: (0, 0)),           # dw taps (resident)
            pl.BlockSpec((bt * Cin, 1), lambda b: (0, 0)),           # BN1 bias
            pl.BlockSpec((bt * Cout, bt * Cin), lambda b: (0, 0)),   # block-diag pw weight
            pl.BlockSpec((bt * Cout, 1), lambda b: (0, 0)),          # BN2 bias
        ],
        out_specs=pl.BlockSpec((bt * Cout, H * W), lambda b: (b, 0)),  # lane-dense output
        scratch_shapes=[
            pltpu.VMEM((bt * Cin, (H + 2) * (W + 2)), jnp.float32),    # padded planes
            pltpu.VMEM((bt * Cin, H * W), jnp.float32),                # compacted dw out
        ],
        compiler_params=pltpu.CompilerParams(
            dimension_semantics=("parallel",),
            vmem_limit_bytes=32 * 1024 * 1024,
        ),
        cost_estimate=pl.CostEstimate(
            flops=flops, transcendentals=0, bytes_accessed=bytes_accessed),
    )(x_flat, wdw_rows, b1_col, wbig, b2_col)

    # Free metadata-only reshape back to NCHW.
    return out_flat.reshape(N, Cout, H, W)


def _reference(x_nchw, w_dw, w_pw, bn1, bn2):
    """Pure-JAX reference mirroring the PyTorch module (eval-mode BN)."""
    eps = 1e-5
    Cin = x_nchw.shape[1]
    y = lax.conv_general_dilated(
        x_nchw, w_dw, window_strides=(1, 1), padding=((1, 1), (1, 1)),
        dimension_numbers=("NCHW", "OIHW", "NCHW"), feature_group_count=Cin)
    s1 = bn1["gamma"] / jnp.sqrt(bn1["var"] + eps)
    y = y * s1[None, :, None, None] + (bn1["beta"] - bn1["mean"] * s1)[None, :, None, None]
    y = jnp.where(y > 0, y, 0.01 * y)
    z = lax.conv_general_dilated(
        y, w_pw, window_strides=(1, 1), padding=((0, 0), (0, 0)),
        dimension_numbers=("NCHW", "OIHW", "NCHW"))
    s2 = bn2["gamma"] / jnp.sqrt(bn2["var"] + eps)
    z = z * s2[None, :, None, None] + (bn2["beta"] - bn2["mean"] * s2)[None, :, None, None]
    z = jnp.where(z > 0, z, 0.1 * z)
    return z


if __name__ == "__main__":
    key = jax.random.PRNGKey(0)
    (k_x, k_dw, k_pw, k_g1, k_b1, k_m1, k_v1, k_g2, k_b2, k_m2, k_v2) = jax.random.split(key, 11)

    N, Cin, Cout, H, W = 2, 4, 8, 16, 16

    x = jax.random.normal(k_x, (N, Cin, H, W), jnp.float32)
    w_dw = jax.random.normal(k_dw, (Cin, 1, 3, 3), jnp.float32) * 0.3   # groups=Cin
    w_pw = jax.random.normal(k_pw, (Cout, Cin, 1, 1), jnp.float32) * 0.3

    bn1 = dict(gamma=1.0 + 0.1 * jax.random.normal(k_g1, (Cin,), jnp.float32),
               beta=0.1 * jax.random.normal(k_b1, (Cin,), jnp.float32),
               mean=0.1 * jax.random.normal(k_m1, (Cin,), jnp.float32),
               var=jnp.abs(1.0 + 0.1 * jax.random.normal(k_v1, (Cin,), jnp.float32)))
    bn2 = dict(gamma=1.0 + 0.1 * jax.random.normal(k_g2, (Cout,), jnp.float32),
               beta=0.1 * jax.random.normal(k_b2, (Cout,), jnp.float32),
               mean=0.1 * jax.random.normal(k_m2, (Cout,), jnp.float32),
               var=jnp.abs(1.0 + 0.1 * jax.random.normal(k_v2, (Cout,), jnp.float32)))

    out = conv_dw_forward(x, w_dw, w_pw, bn1, bn2)
    jax.block_until_ready(out)

    ref = _reference(x, w_dw, w_pw, bn1, bn2)
    assert out.shape == (N, Cout, H, W), out.shape
    err = float(jnp.max(jnp.abs(out - ref)))
    assert jnp.allclose(out, ref, atol=1e-4, rtol=1e-4), err

    print("KERNEL_OK")
</pallas_src>

<mosaic_0001>
module attributes {stable_mosaic.version = 11 : i64} {
  func.func @_conv_dw_kernel(%arg0: i32, %arg1: memref<8x256xf32, #tpu.memory_space<vmem>>, %arg2: memref<8x9xf32, #tpu.memory_space<vmem>>, %arg3: memref<8x1xf32, #tpu.memory_space<vmem>>, %arg4: memref<16x8xf32, #tpu.memory_space<vmem>>, %arg5: memref<16x1xf32, #tpu.memory_space<vmem>>, %arg6: memref<16x256xf32, #tpu.memory_space<vmem>>, %arg7: memref<8x324xf32, #tpu.memory_space<vmem>>, %arg8: memref<8x256xf32, #tpu.memory_space<vmem>>) attributes {dimension_semantics = [#tpu.dimension_semantics<parallel>], iteration_bounds = array<i64: 1>, scalar_prefetch = 0 : i64, scratch_operands = 2 : i64, tpu.core_type = #tpu.core_type<tc>, window_params = [{transform_indices = @transform_0, window_bounds = array<i64: 8, 256>}, {pipeline_mode = #tpu.pipeline_mode<synchronous>, transform_indices = @transform_1, window_bounds = array<i64: 8, 9>}, {pipeline_mode = #tpu.pipeline_mode<synchronous>, transform_indices = @transform_2, window_bounds = array<i64: 8, 1>}, {pipeline_mode = #tpu.pipeline_mode<synchronous>, transform_indices = @transform_3, window_bounds = array<i64: 16, 8>}, {pipeline_mode = #tpu.pipeline_mode<synchronous>, transform_indices = @transform_4, window_bounds = array<i64: 16, 1>}, {transform_indices = @transform_5, window_bounds = array<i64: 16, 256>}]} {
    %cst = arith.constant 0.000000e+00 : f32
    %0 = vector.broadcast %cst : f32 to vector<8x324xf32>
    %c0 = arith.constant 0 : index
    %c0_0 = arith.constant 0 : index
    %1 = vector.load %arg7[%c0, %c0_0] : memref<8x324xf32, #tpu.memory_space<vmem>>, vector<8x324xf32>
    tpu.vector_store %arg7[%c0, %c0_0], %0 {strides = array<i32>} : memref<8x324xf32, #tpu.memory_space<vmem>>, vector<8x324xf32>,
    %c0_1 = arith.constant 0 : index
    %c0_2 = arith.constant 0 : index
    %2 = vector.load %arg1[%c0_1, %c0_2] : memref<8x256xf32, #tpu.memory_space<vmem>>, vector<8x256xf32>
    %3 = vector.extract_strided_slice %2 {offsets = [0, 0], sizes = [8, 16], strides = [1, 1]} : vector<8x256xf32> to vector<8x16xf32>
    %c0_3 = arith.constant 0 : index
    %c19 = arith.constant 19 : index
    %4 = vector.load %arg7[%c0_3, %c19] : memref<8x324xf32, #tpu.memory_space<vmem>>, vector<8x16xf32>
    tpu.vector_store %arg7[%c0_3, %c19], %3 {strides = array<i32>} : memref<8x324xf32, #tpu.memory_space<vmem>>, vector<8x16xf32>,
    %5 = vector.extract_strided_slice %2 {offsets = [0, 16], sizes = [8, 16], strides = [1, 1]} : vector<8x256xf32> to vector<8x16xf32>
    %c0_4 = arith.constant 0 : index
    %c37 = arith.constant 37 : index
    %6 = vector.load %arg7[%c0_4, %c37] : memref<8x324xf32, #tpu.memory_space<vmem>>, vector<8x16xf32>
    tpu.vector_store %arg7[%c0_4, %c37], %5 {strides = array<i32>} : memref<8x324xf32, #tpu.memory_space<vmem>>, vector<8x16xf32>,
    %7 = vector.extract_strided_slice %2 {offsets = [0, 32], sizes = [8, 16], strides = [1, 1]} : vector<8x256xf32> to vector<8x16xf32>
    %c0_5 = arith.constant 0 : index
    %c55 = arith.constant 55 : index
    %8 = vector.load %arg7[%c0_5, %c55] : memref<8x324xf32, #tpu.memory_space<vmem>>, vector<8x16xf32>
    tpu.vector_store %arg7[%c0_5, %c55], %7 {strides = array<i32>} : memref<8x324xf32, #tpu.memory_space<vmem>>, vector<8x16xf32>,
    %9 = vector.extract_strided_slice %2 {offsets = [0, 48], sizes = [8, 16], strides = [1, 1]} : vector<8x256xf32> to vector<8x16xf32>
    %c0_6 = arith.constant 0 : index
    %c73 = arith.constant 73 : index
    %10 = vector.load %arg7[%c0_6, %c73] : memref<8x324xf32, #tpu.memory_space<vmem>>, vector<8x16xf32>
    tpu.vector_store %arg7[%c0_6, %c73], %9 {strides = array<i32>} : memref<8x324xf32, #tpu.memory_space<vmem>>, vector<8x16xf32>,
    %11 = vector.extract_strided_slice %2 {offsets = [0, 64], sizes = [8, 16], strides = [1, 1]} : vector<8x256xf32> to vector<8x16xf32>
    %c0_7 = arith.constant 0 : index
    %c91 = arith.constant 91 : index
    %12 = vector.load %arg7[%c0_7, %c91] : memref<8x324xf32, #tpu.memory_space<vmem>>, vector<8x16xf32>
    tpu.vector_store %arg7[%c0_7, %c91], %11 {strides = array<i32>} : memref<8x324xf32, #tpu.memory_space<vmem>>, vector<8x16xf32>,
    %13 = vector.extract_strided_slice %2 {offsets = [0, 80], sizes = [8, 16], strides = [1, 1]} : vector<8x256xf32> to vector<8x16xf32>
    %c0_8 = arith.constant 0 : index
    %c109 = arith.constant 109 : index
    %14 = vector.load %arg7[%c0_8, %c109] : memref<8x324xf32, #tpu.memory_space<vmem>>, vector<8x16xf32>
    tpu.vector_store %arg7[%c0_8, %c109], %13 {strides = array<i32>} : memref<8x324xf32, #tpu.memory_space<vmem>>, vector<8x16xf32>,
    %15 = vector.extract_strided_slice %2 {offsets = [0, 96], sizes = [8, 16], strides = [1, 1]} : vector<8x256xf32> to vector<8x16xf32>
    %c0_9 = arith.constant 0 : index
    %c127 = arith.constant 127 : index
    %16 = vector.load %arg7[%c0_9, %c127] : memref<8x324xf32, #tpu.memory_space<vmem>>, vector<8x16xf32>
    tpu.vector_store %arg7[%c0_9, %c127], %15 {strides = array<i32>} : memref<8x324xf32, #tpu.memory_space<vmem>>, vector<8x16xf32>,
    %17 = vector.extract_strided_slice %2 {offsets = [0, 112], sizes = [8, 16], strides = [1, 1]} : vector<8x256xf32> to vector<8x16xf32>
    %c0_10 = arith.constant 0 : index
    %c145 = arith.constant 145 : index
    %18 = vector.load %arg7[%c0_10, %c145] : memref<8x324xf32, #tpu.memory_space<vmem>>, vector<8x16xf32>
    tpu.vector_store %arg7[%c0_10, %c145], %17 {strides = array<i32>} : memref<8x324xf32, #tpu.memory_space<vmem>>, vector<8x16xf32>,
    %19 = vector.extract_strided_slice %2 {offsets = [0, 128], sizes = [8, 16], strides = [1, 1]} : vector<8x256xf32> to vector<8x16xf32>
    %c0_11 = arith.constant 0 : index
    %c163 = arith.constant 163 : index
    %20 = vector.load %arg7[%c0_11, %c163] : memref<8x324xf32, #tpu.memory_space<vmem>>, vector<8x16xf32>
    tpu.vector_store %arg7[%c0_11, %c163], %19 {strides = array<i32>} : memref<8x324xf32, #tpu.memory_space<vmem>>, vector<8x16xf32>,
    %21 = vector.extract_strided_slice %2 {offsets = [0, 144], sizes = [8, 16], strides = [1, 1]} : vector<8x256xf32> to vector<8x16xf32>
    %c0_12 = arith.constant 0 : index
    %c181 = arith.constant 181 : index
    %22 = vector.load %arg7[%c0_12, %c181] : memref<8x324xf32, #tpu.memory_space<vmem>>, vector<8x16xf32>
    tpu.vector_store %arg7[%c0_12, %c181], %21 {strides = array<i32>} : memref<8x324xf32, #tpu.memory_space<vmem>>, vector<8x16xf32>,
    %23 = vector.extract_strided_slice %2 {offsets = [0, 160], sizes = [8, 16], strides = [1, 1]} : vector<8x256xf32> to vector<8x16xf32>
    %c0_13 = arith.constant 0 : index
    %c199 = arith.constant 199 : index
    %24 = vector.load %arg7[%c0_13, %c199] : memref<8x324xf32, #tpu.memory_space<vmem>>, vector<8x16xf32>
    tpu.vector_store %arg7[%c0_13, %c199], %23 {strides = array<i32>} : memref<8x324xf32, #tpu.memory_space<vmem>>, vector<8x16xf32>,
    %25 = vector.extract_strided_slice %2 {offsets = [0, 176], sizes = [8, 16], strides = [1, 1]} : vector<8x256xf32> to vector<8x16xf32>
    %c0_14 = arith.constant 0 : index
    %c217 = arith.constant 217 : index
    %26 = vector.load %arg7[%c0_14, %c217] : memref<8x324xf32, #tpu.memory_space<vmem>>, vector<8x16xf32>
    tpu.vector_store %arg7[%c0_14, %c217], %25 {strides = array<i32>} : memref<8x324xf32, #tpu.memory_space<vmem>>, vector<8x16xf32>,
    %27 = vector.extract_strided_slice %2 {offsets = [0, 192], sizes = [8, 16], strides = [1, 1]} : vector<8x256xf32> to vector<8x16xf32>
    %c0_15 = arith.constant 0 : index
    %c235 = arith.constant 235 : index
    %28 = vector.load %arg7[%c0_15, %c235] : memref<8x324xf32, #tpu.memory_space<vmem>>, vector<8x16xf32>
    tpu.vector_store %arg7[%c0_15, %c235], %27 {strides = array<i32>} : memref<8x324xf32, #tpu.memory_space<vmem>>, vector<8x16xf32>,
    %29 = vector.extract_strided_slice %2 {offsets = [0, 208], sizes = [8, 16], strides = [1, 1]} : vector<8x256xf32> to vector<8x16xf32>
    %c0_16 = arith.constant 0 : index
    %c253 = arith.constant 253 : index
    %30 = vector.load %arg7[%c0_16, %c253] : memref<8x324xf32, #tpu.memory_space<vmem>>, vector<8x16xf32>
    tpu.vector_store %arg7[%c0_16, %c253], %29 {strides = array<i32>} : memref<8x324xf32, #tpu.memory_space<vmem>>, vector<8x16xf32>,
    %31 = vector.extract_strided_slice %2 {offsets = [0, 224], sizes = [8, 16], strides = [1, 1]} : vector<8x256xf32> to vector<8x16xf32>
    %c0_17 = arith.constant 0 : index
    %c271 = arith.constant 271 : index
    %32 = vector.load %arg7[%c0_17, %c271] : memref<8x324xf32, #tpu.memory_space<vmem>>, vector<8x16xf32>
    tpu.vector_store %arg7[%c0_17, %c271], %31 {strides = array<i32>} : memref<8x324xf32, #tpu.memory_space<vmem>>, vector<8x16xf32>,
    %33 = vector.extract_strided_slice %2 {offsets = [0, 240], sizes = [8, 16], strides = [1, 1]} : vector<8x256xf32> to vector<8x16xf32>
    %c0_18 = arith.constant 0 : index
    %c289 = arith.constant 289 : index
    %34 = vector.load %arg7[%c0_18, %c289] : memref<8x324xf32, #tpu.memory_space<vmem>>, vector<8x16xf32>
    tpu.vector_store %arg7[%c0_18, %c289], %33 {strides = array<i32>} : memref<8x324xf32, #tpu.memory_space<vmem>>, vector<8x16xf32>,
    %c0_19 = arith.constant 0 : index
    %c0_20 = arith.constant 0 : index
    %35 = vector.load %arg7[%c0_19, %c0_20] : memref<8x324xf32, #tpu.memory_space<vmem>>, vector<8x324xf32>
    %c0_21 = arith.constant 0 : index
    %c0_22 = arith.constant 0 : index
    %36 = vector.load %arg2[%c0_21, %c0_22] : memref<8x9xf32, #tpu.memory_space<vmem>>, vector<8x9xf32>
    %37 = vector.extract_strided_slice %35 {offsets = [0, 0], sizes = [8, 286], strides = [1, 1]} : vector<8x324xf32> to vector<8x286xf32>
    %38 = vector.extract_strided_slice %36 {offsets = [0, 0], sizes = [8, 1], strides = [1, 1]} : vector<8x9xf32> to vector<8x1xf32>
    %39 = vector.broadcast %38 : vector<8x1xf32> to vector<8x286xf32>
    %40 = arith.mulf %37, %39 : vector<8x286xf32>
    %41 = vector.extract_strided_slice %35 {offsets = [0, 1], sizes = [8, 286], strides = [1, 1]} : vector<8x324xf32> to vector<8x286xf32>
    %42 = vector.extract_strided_slice %36 {offsets = [0, 1], sizes = [8, 1], strides = [1, 1]} : vector<8x9xf32> to vector<8x1xf32>
    %43 = vector.broadcast %42 : vector<8x1xf32> to vector<8x286xf32>
    %44 = arith.mulf %41, %43 : vector<8x286xf32>
    %45 = arith.addf %40, %44 : vector<8x286xf32>
    %46 = vector.extract_strided_slice %35 {offsets = [0, 2], sizes = [8, 286], strides = [1, 1]} : vector<8x324xf32> to vector<8x286xf32>
    %47 = vector.extract_strided_slice %36 {offsets = [0, 2], sizes = [8, 1], strides = [1, 1]} : vector<8x9xf32> to vector<8x1xf32>
    %48 = vector.broadcast %47 : vector<8x1xf32> to vector<8x286xf32>
    %49 = arith.mulf %46, %48 : vector<8x286xf32>
    %50 = arith.addf %45, %49 : vector<8x286xf32>
    %51 = vector.extract_strided_slice %35 {offsets = [0, 18], sizes = [8, 286], strides = [1, 1]} : vector<8x324xf32> to vector<8x286xf32>
    %52 = vector.extract_strided_slice %36 {offsets = [0, 3], sizes = [8, 1], strides = [1, 1]} : vector<8x9xf32> to vector<8x1xf32>
    %53 = vector.broadcast %52 : vector<8x1xf32> to vector<8x286xf32>
    %54 = arith.mulf %51, %53 : vector<8x286xf32>
    %55 = vector.extract_strided_slice %35 {offsets = [0, 19], sizes = [8, 286], strides = [1, 1]} : vector<8x324xf32> to vector<8x286xf32>
    %56 = vector.extract_strided_slice %36 {offsets = [0, 4], sizes = [8, 1], strides = [1, 1]} : vector<8x9xf32> to vector<8x1xf32>
    %57 = vector.broadcast %56 : vector<8x1xf32> to vector<8x286xf32>
    %58 = arith.mulf %55, %57 : vector<8x286xf32>
    %59 = arith.addf %54, %58 : vector<8x286xf32>
    %60 = vector.extract_strided_slice %35 {offsets = [0, 20], sizes = [8, 286], strides = [1, 1]} : vector<8x324xf32> to vector<8x286xf32>
    %61 = vector.extract_strided_slice %36 {offsets = [0, 5], sizes = [8, 1], strides = [1, 1]} : vector<8x9xf32> to vector<8x1xf32>
    %62 = vector.broadcast %61 : vector<8x1xf32> to vector<8x286xf32>
    %63 = arith.mulf %60, %62 : vector<8x286xf32>
    %64 = arith.addf %59, %63 : vector<8x286xf32>
    %65 = vector.extract_strided_slice %35 {offsets = [0, 36], sizes = [8, 286], strides = [1, 1]} : vector<8x324xf32> to vector<8x286xf32>
    %66 = vector.extract_strided_slice %36 {offsets = [0, 6], sizes = [8, 1], strides = [1, 1]} : vector<8x9xf32> to vector<8x1xf32>
    %67 = vector.broadcast %66 : vector<8x1xf32> to vector<8x286xf32>
    %68 = arith.mulf %65, %67 : vector<8x286xf32>
    %69 = vector.extract_strided_slice %35 {offsets = [0, 37], sizes = [8, 286], strides = [1, 1]} : vector<8x324xf32> to vector<8x286xf32>
    %70 = vector.extract_strided_slice %36 {offsets = [0, 7], sizes = [8, 1], strides = [1, 1]} : vector<8x9xf32> to vector<8x1xf32>
    %71 = vector.broadcast %70 : vector<8x1xf32> to vector<8x286xf32>
    %72 = arith.mulf %69, %71 : vector<8x286xf32>
    %73 = arith.addf %68, %72 : vector<8x286xf32>
    %74 = vector.extract_strided_slice %35 {offsets = [0, 38], sizes = [8, 286], strides = [1, 1]} : vector<8x324xf32> to vector<8x286xf32>
    %75 = vector.extract_strided_slice %36 {offsets = [0, 8], sizes = [8, 1], strides = [1, 1]} : vector<8x9xf32> to vector<8x1xf32>
    %76 = vector.broadcast %75 : vector<8x1xf32> to vector<8x286xf32>
    %77 = arith.mulf %74, %76 : vector<8x286xf32>
    %78 = arith.addf %73, %77 : vector<8x286xf32>
    %79 = arith.addf %50, %64 : vector<8x286xf32>
    %80 = arith.addf %79, %78 : vector<8x286xf32>
    %81 = vector.extract_strided_slice %80 {offsets = [0, 0], sizes = [8, 16], strides = [1, 1]} : vector<8x286xf32> to vector<8x16xf32>
    %c0_23 = arith.constant 0 : index
    %c0_24 = arith.constant 0 : index
    %82 = vector.load %arg8[%c0_23, %c0_24] : memref<8x256xf32, #tpu.memory_space<vmem>>, vector<8x16xf32>
    tpu.vector_store %arg8[%c0_23, %c0_24], %81 {strides = array<i32>} : memref<8x256xf32, #tpu.memory_space<vmem>>, vector<8x16xf32>,
    %83 = vector.extract_strided_slice %80 {offsets = [0, 18], sizes = [8, 16], strides = [1, 1]} : vector<8x286xf32> to vector<8x16xf32>
    %c0_25 = arith.constant 0 : index
    %c16 = arith.constant 16 : index
    %84 = vector.load %arg8[%c0_25, %c16] : memref<8x256xf32, #tpu.memory_space<vmem>>, vector<8x16xf32>
    tpu.vector_store %arg8[%c0_25, %c16], %83 {strides = array<i32>} : memref<8x256xf32, #tpu.memory_space<vmem>>, vector<8x16xf32>,
    %85 = vector.extract_strided_slice %80 {offsets = [0, 36], sizes = [8, 16], strides = [1, 1]} : vector<8x286xf32> to vector<8x16xf32>
    %c0_26 = arith.constant 0 : index
    %c32 = arith.constant 32 : index
    %86 = vector.load %arg8[%c0_26, %c32] : memref<8x256xf32, #tpu.memory_space<vmem>>, vector<8x16xf32>
    tpu.vector_store %arg8[%c0_26, %c32], %85 {strides = array<i32>} : memref<8x256xf32, #tpu.memory_space<vmem>>, vector<8x16xf32>,
    %87 = vector.extract_strided_slice %80 {offsets = [0, 54], sizes = [8, 16], strides = [1, 1]} : vector<8x286xf32> to vector<8x16xf32>
    %c0_27 = arith.constant 0 : index
    %c48 = arith.constant 48 : index
    %88 = vector.load %arg8[%c0_27, %c48] : memref<8x256xf32, #tpu.memory_space<vmem>>, vector<8x16xf32>
    tpu.vector_store %arg8[%c0_27, %c48], %87 {strides = array<i32>} : memref<8x256xf32, #tpu.memory_space<vmem>>, vector<8x16xf32>,
    %89 = vector.extract_strided_slice %80 {offsets = [0, 72], sizes = [8, 16], strides = [1, 1]} : vector<8x286xf32> to vector<8x16xf32>
    %c0_28 = arith.constant 0 : index
    %c64 = arith.constant 64 : index
    %90 = vector.load %arg8[%c0_28, %c64] : memref<8x256xf32, #tpu.memory_space<vmem>>, vector<8x16xf32>
    tpu.vector_store %arg8[%c0_28, %c64], %89 {strides = array<i32>} : memref<8x256xf32, #tpu.memory_space<vmem>>, vector<8x16xf32>,
    %91 = vector.extract_strided_slice %80 {offsets = [0, 90], sizes = [8, 16], strides = [1, 1]} : vector<8x286xf32> to vector<8x16xf32>
    %c0_29 = arith.constant 0 : index
    %c80 = arith.constant 80 : index
    %92 = vector.load %arg8[%c0_29, %c80] : memref<8x256xf32, #tpu.memory_space<vmem>>, vector<8x16xf32>
    tpu.vector_store %arg8[%c0_29, %c80], %91 {strides = array<i32>} : memref<8x256xf32, #tpu.memory_space<vmem>>, vector<8x16xf32>,
    %93 = vector.extract_strided_slice %80 {offsets = [0, 108], sizes = [8, 16], strides = [1, 1]} : vector<8x286xf32> to vector<8x16xf32>
    %c0_30 = arith.constant 0 : index
    %c96 = arith.constant 96 : index
    %94 = vector.load %arg8[%c0_30, %c96] : memref<8x256xf32, #tpu.memory_space<vmem>>, vector<8x16xf32>
    tpu.vector_store %arg8[%c0_30, %c96], %93 {strides = array<i32>} : memref<8x256xf32, #tpu.memory_space<vmem>>, vector<8x16xf32>,
    %95 = vector.extract_strided_slice %80 {offsets = [0, 126], sizes = [8, 16], strides = [1, 1]} : vector<8x286xf32> to vector<8x16xf32>
    %c0_31 = arith.constant 0 : index
    %c112 = arith.constant 112 : index
    %96 = vector.load %arg8[%c0_31, %c112] : memref<8x256xf32, #tpu.memory_space<vmem>>, vector<8x16xf32>
    tpu.vector_store %arg8[%c0_31, %c112], %95 {strides = array<i32>} : memref<8x256xf32, #tpu.memory_space<vmem>>, vector<8x16xf32>,
    %97 = vector.extract_strided_slice %80 {offsets = [0, 144], sizes = [8, 16], strides = [1, 1]} : vector<8x286xf32> to vector<8x16xf32>
    %c0_32 = arith.constant 0 : index
    %c128 = arith.constant 128 : index
    %98 = vector.load %arg8[%c0_32, %c128] : memref<8x256xf32, #tpu.memory_space<vmem>>, vector<8x16xf32>
    tpu.vector_store %arg8[%c0_32, %c128], %97 {strides = array<i32>} : memref<8x256xf32, #tpu.memory_space<vmem>>, vector<8x16xf32>,
    %99 = vector.extract_strided_slice %80 {offsets = [0, 162], sizes = [8, 16], strides = [1, 1]} : vector<8x286xf32> to vector<8x16xf32>
    %c0_33 = arith.constant 0 : index
    %c144 = arith.constant 144 : index
    %100 = vector.load %arg8[%c0_33, %c144] : memref<8x256xf32, #tpu.memory_space<vmem>>, vector<8x16xf32>
    tpu.vector_store %arg8[%c0_33, %c144], %99 {strides = array<i32>} : memref<8x256xf32, #tpu.memory_space<vmem>>, vector<8x16xf32>,
    %101 = vector.extract_strided_slice %80 {offsets = [0, 180], sizes = [8, 16], strides = [1, 1]} : vector<8x286xf32> to vector<8x16xf32>
    %c0_34 = arith.constant 0 : index
    %c160 = arith.constant 160 : index
    %102 = vector.load %arg8[%c0_34, %c160] : memref<8x256xf32, #tpu.memory_space<vmem>>, vector<8x16xf32>
    tpu.vector_store %arg8[%c0_34, %c160], %101 {strides = array<i32>} : memref<8x256xf32, #tpu.memory_space<vmem>>, vector<8x16xf32>,
    %103 = vector.extract_strided_slice %80 {offsets = [0, 198], sizes = [8, 16], strides = [1, 1]} : vector<8x286xf32> to vector<8x16xf32>
    %c0_35 = arith.constant 0 : index
    %c176 = arith.constant 176 : index
    %104 = vector.load %arg8[%c0_35, %c176] : memref<8x256xf32, #tpu.memory_space<vmem>>, vector<8x16xf32>
    tpu.vector_store %arg8[%c0_35, %c176], %103 {strides = array<i32>} : memref<8x256xf32, #tpu.memory_space<vmem>>, vector<8x16xf32>,
    %105 = vector.extract_strided_slice %80 {offsets = [0, 216], sizes = [8, 16], strides = [1, 1]} : vector<8x286xf32> to vector<8x16xf32>
    %c0_36 = arith.constant 0 : index
    %c192 = arith.constant 192 : index
    %106 = vector.load %arg8[%c0_36, %c192] : memref<8x256xf32, #tpu.memory_space<vmem>>, vector<8x16xf32>
    tpu.vector_store %arg8[%c0_36, %c192], %105 {strides = array<i32>} : memref<8x256xf32, #tpu.memory_space<vmem>>, vector<8x16xf32>,
    %107 = vector.extract_strided_slice %80 {offsets = [0, 234], sizes = [8, 16], strides = [1, 1]} : vector<8x286xf32> to vector<8x16xf32>
    %c0_37 = arith.constant 0 : index
    %c208 = arith.constant 208 : index
    %108 = vector.load %arg8[%c0_37, %c208] : memref<8x256xf32, #tpu.memory_space<vmem>>, vector<8x16xf32>
    tpu.vector_store %arg8[%c0_37, %c208], %107 {strides = array<i32>} : memref<8x256xf32, #tpu.memory_space<vmem>>, vector<8x16xf32>,
    %109 = vector.extract_strided_slice %80 {offsets = [0, 252], sizes = [8, 16], strides = [1, 1]} : vector<8x286xf32> to vector<8x16xf32>
    %c0_38 = arith.constant 0 : index
    %c224 = arith.constant 224 : index
    %110 = vector.load %arg8[%c0_38, %c224] : memref<8x256xf32, #tpu.memory_space<vmem>>, vector<8x16xf32>
    tpu.vector_store %arg8[%c0_38, %c224], %109 {strides = array<i32>} : memref<8x256xf32, #tpu.memory_space<vmem>>, vector<8x16xf32>,
    %111 = vector.extract_strided_slice %80 {offsets = [0, 270], sizes = [8, 16], strides = [1, 1]} : vector<8x286xf32> to vector<8x16xf32>
    %c0_39 = arith.constant 0 : index
    %c240 = arith.constant 240 : index
    %112 = vector.load %arg8[%c0_39, %c240] : memref<8x256xf32, #tpu.memory_space<vmem>>, vector<8x16xf32>
    tpu.vector_store %arg8[%c0_39, %c240], %111 {strides = array<i32>} : memref<8x256xf32, #tpu.memory_space<vmem>>, vector<8x16xf32>,
    %c0_40 = arith.constant 0 : index
    %c0_41 = arith.constant 0 : index
    %113 = vector.load %arg8[%c0_40, %c0_41] : memref<8x256xf32, #tpu.memory_space<vmem>>, vector<8x256xf32>
    %c0_42 = arith.constant 0 : index
    %c0_43 = arith.constant 0 : index
    %114 = vector.load %arg3[%c0_42, %c0_43] : memref<8x1xf32, #tpu.memory_space<vmem>>, vector<8x1xf32>
    %115 = vector.broadcast %114 : vector<8x1xf32> to vector<8x256xf32>
    %116 = arith.addf %113, %115 : vector<8x256xf32>
    %cst_44 = arith.constant 0.000000e+00 : f32
    %117 = vector.broadcast %cst_44 : f32 to vector<8x256xf32>
    %118 = arith.cmpf ogt, %116, %117 : vector<8x256xf32>
    %cst_45 = arith.constant 0.00999999977 : f32
    %119 = vector.broadcast %cst_45 : f32 to vector<8x256xf32>
    %120 = arith.mulf %119, %116 : vector<8x256xf32>
    %121 = arith.select %118, %116, %120 : vector<8x256xi1>, vector<8x256xf32>
    %c0_46 = arith.constant 0 : index
    %c0_47 = arith.constant 0 : index
    %122 = vector.load %arg4[%c0_46, %c0_47] : memref<16x8xf32, #tpu.memory_space<vmem>>, vector<16x8xf32>
    %cst_48 = arith.constant dense<0.000000e+00> : vector<16x256xf32>
    %123 = tpu.matmul %122, %121, %cst_48 {dimension_numbers = #tpu.dot_dimension_numbers<[1], [0], [0], [1], [0, 0, 1, 1], [], []>} : vector<16x8xf32>, vector<8x256xf32>, vector<16x256xf32> -> vector<16x256xf32>
    %c0_49 = arith.constant 0 : index
    %c0_50 = arith.constant 0 : index
    %124 = vector.load %arg5[%c0_49, %c0_50] : memref<16x1xf32, #tpu.memory_space<vmem>>, vector<16x1xf32>
    %125 = vector.broadcast %124 : vector<16x1xf32> to vector<16x256xf32>
    %126 = arith.addf %123, %125 : vector<16x256xf32>
    %cst_51 = arith.constant 0.000000e+00 : f32
    %127 = vector.broadcast %cst_51 : f32 to vector<16x256xf32>
    %128 = arith.cmpf ogt, %126, %127 : vector<16x256xf32>
    %cst_52 = arith.constant 1.000000e-01 : f32
    %129 = vector.broadcast %cst_52 : f32 to vector<16x256xf32>
    %130 = arith.mulf %129, %126 : vector<16x256xf32>
    %131 = arith.select %128, %126, %130 : vector<16x256xi1>, vector<16x256xf32>
    %c0_53 = arith.constant 0 : index
    %c0_54 = arith.constant 0 : index
    %132 = vector.load %arg6[%c0_53, %c0_54] : memref<16x256xf32, #tpu.memory_space<vmem>>, vector<16x256xf32>
    tpu.vector_store %arg6[%c0_53, %c0_54], %131 {strides = array<i32>} : memref<16x256xf32, #tpu.memory_space<vmem>>, vector<16x256xf32>,
    return
  }
  func.func @transform_0(%arg0: i32) -> (i32, i32) {
    %c0_i32 = arith.constant 0 : i32
    %c0_i32_0 = arith.constant 0 : i32
    return %arg0, %c0_i32 : i32, i32
  }
  func.func @transform_1(%arg0: i32) -> (i32, i32) {
    %c0_i32 = arith.constant 0 : i32
    %c0_i32_0 = arith.constant 0 : i32
    %c0_i32_1 = arith.constant 0 : i32
    return %c0_i32, %c0_i32_0 : i32, i32
  }
  func.func @transform_2(%arg0: i32) -> (i32, i32) {
    %c0_i32 = arith.constant 0 : i32
    %c0_i32_0 = arith.constant 0 : i32
    %c0_i32_1 = arith.constant 0 : i32
    return %c0_i32, %c0_i32_0 : i32, i32
  }
  func.func @transform_3(%arg0: i32) -> (i32, i32) {
    %c0_i32 = arith.constant 0 : i32
    %c0_i32_0 = arith.constant 0 : i32
    %c0_i32_1 = arith.constant 0 : i32
    return %c0_i32, %c0_i32_0 : i32, i32
  }
  func.func @transform_4(%arg0: i32) -> (i32, i32) {
    %c0_i32 = arith.constant 0 : i32
    %c0_i32_0 = arith.constant 0 : i32
    %c0_i32_1 = arith.constant 0 : i32
    return %c0_i32, %c0_i32_0 : i32, i32
  }
  func.func @transform_5(%arg0: i32) -> (i32, i32) {
    %c0_i32 = arith.constant 0 : i32
    %c0_i32_0 = arith.constant 0 : i32
    return %arg0, %c0_i32 : i32, i32
  }
}

</mosaic_0001>

<llo_original>
// kernel: tile.23
$region0: #{tile.23}
  #allocation0 [shape = 's32[1]{0}', space=sflag, size = 0x4, scoped, tag = 'scoped memory for tile.23']
  %s0 = inlined_call_operand.vmem [shape: f32[4], index: 0, kind: input, shape index: {}]
  %s1 = inlined_call_operand.vmem [shape: f32[2,4], index: 1, kind: output, shape index: {}]
  // Predicated region
  $region2: #{tile.23} parent=0 // pred_check
    _
  $region3: #{tile.23} parent=0 // pred_check_branch
    %3 = sbr.rel (0) target = $region5
  $region4: #{tile.23} parent=0 // pred_region
    _
  $region5: #{tile.23} parent=0 // pred_fallthru
    _
  %v4 = vld [vmem:[%s0] ss:$0 sm:$0xff]
  %5 = vst [vmem:[%s1] sm:$0x3] %v4

// kernel: tile.28
$region0: #{tile.28}
  #allocation0 [shape = 's32[1]{0}', space=sflag, size = 0x4, scoped, tag = 'scoped memory for tile.28']
  %s0 = inlined_call_operand.vmem [shape: f32[8], index: 0, kind: input, shape index: {}]
  %s1 = inlined_call_operand.vmem [shape: f32[2,8], index: 1, kind: output, shape index: {}]
  // Predicated region
  $region2: #{tile.28} parent=0 // pred_check
    _
  $region3: #{tile.28} parent=0 // pred_check_branch
    %3 = sbr.rel (0) target = $region5
  $region4: #{tile.28} parent=0 // pred_region
    _
  $region5: #{tile.28} parent=0 // pred_fallthru
    _
  %v4 = vld [vmem:[%s0] ss:$0 sm:$0xff]
  %5 = vst [vmem:[%s1] sm:$0x3] %v4

// kernel: tile.0
$region0: #{tile.0}
  %s0 = inlined_call_operand.vmem [shape: f32[2,4], index: 0, kind: input, shape index: {}]
  %s1 = inlined_call_operand.vmem [shape: f32[8,1], index: 1, kind: output, shape index: {}]
  $region1: #{tile.0} parent=0
    #allocation0 [shape = 'u8[4096]{0}', space=vmem, size = 0x1000, scoped, tag = 'scoped mem for input reshape']
    %s3 = sshllo.u32 0, 2
    %v4 = vld [vmem:[%s0] sm:%s3]
    %5 = vst [vmem:[#allocation0] sm:%s3] %v4
    %v6 = vld [vmem:[#allocation0] sm:$0x3]
    %vm7 = vcmask 7168
    %8 = vst.msk [vmem:[%s1] ss:$4 sm:$0x3] %vm7, %v6
    %v9 = vld [vmem:[#allocation0] sm:$0x3]
    %10 = vrot.lane.b32.xlu0 %v9, 127
    %v11 = vpop.permute.xlu0 %10
    %vm12 = vcmask 7168
    %s13 = scalar_lea.vmem %s1, 1
    %14 = vst.msk [vmem:[%s13] ss:$4 sm:$0x3] %vm12, %v11
    %v15 = vld [vmem:[#allocation0] sm:$0x3]
    %16 = vrot.lane.b32.xlu0 %v15, 126
    %v17 = vpop.permute.xlu0 %16
    %vm18 = vcmask 7168
    %s19 = scalar_lea.vmem %s1, 2
    %20 = vst.msk [vmem:[%s19] ss:$4 sm:$0x3] %vm18, %v17
    %v21 = vld [vmem:[#allocation0] sm:$0x3]
    %22 = vrot.lane.b32.xlu0 %v21, 125
    %v23 = vpop.permute.xlu0 %22
    %vm24 = vcmask 7168
    %s25 = scalar_lea.vmem %s1, 3
    %26 = vst.msk [vmem:[%s25] ss:$4 sm:$0x3] %vm24, %v23

// kernel: tile.1
$region0: #{tile.1}
  %s0 = inlined_call_operand.vmem [shape: f32[2,8], index: 0, kind: input, shape index: {}]
  %s1 = inlined_call_operand.vmem [shape: f32[16,1], index: 1, kind: output, shape index: {}]
  $region1: #{tile.1} parent=0
    #allocation0 [shape = 'u8[4096]{0}', space=vmem, size = 0x1000, scoped, tag = 'scoped mem for input reshape']
    %s3 = sshllo.u32 0, 2
    %v4 = vld [vmem:[%s0] sm:%s3]
    %5 = vst [vmem:[#allocation0] sm:%s3] %v4
    %v6 = vld [vmem:[#allocation0] sm:$0x3]
    %vm7 = vcmask 7168
    %8 = vst.msk [vmem:[%s1] ss:$8 sm:$0x3] %vm7, %v6
    %v9 = vld [vmem:[#allocation0] sm:$0x3]
    %10 = vrot.lane.b32.xlu0 %v9, 127
    %v11 = vpop.permute.xlu0 %10
    %vm12 = vcmask 7168
    %s13 = scalar_lea.vmem %s1, 1
    %14 = vst.msk [vmem:[%s13] ss:$8 sm:$0x3] %vm12, %v11
    %v15 = vld [vmem:[#allocation0] sm:$0x3]
    %16 = vrot.lane.b32.xlu0 %v15, 126
    %v17 = vpop.permute.xlu0 %16
    %vm18 = vcmask 7168
    %s19 = scalar_lea.vmem %s1, 2
    %20 = vst.msk [vmem:[%s19] ss:$8 sm:$0x3] %vm18, %v17
    %v21 = vld [vmem:[#allocation0] sm:$0x3]
    %22 = vrot.lane.b32.xlu0 %v21, 125
    %v23 = vpop.permute.xlu0 %22
    %vm24 = vcmask 7168
    %s25 = scalar_lea.vmem %s1, 3
    %26 = vst.msk [vmem:[%s25] ss:$8 sm:$0x3] %vm24, %v23
    %v27 = vld [vmem:[#allocation0] sm:$0x3]
    %28 = vrot.lane.b32.xlu0 %v27, 124
    %v29 = vpop.permute.xlu0 %28
    %vm30 = vcmask 7168
    %s31 = scalar_lea.vmem %s1, 4
    %32 = vst.msk [vmem:[%s31] ss:$8 sm:$0x3] %vm30, %v29
    %v33 = vld [vmem:[#allocation0] sm:$0x3]
    %34 = vrot.lane.b32.xlu0 %v33, 123
    %v35 = vpop.permute.xlu0 %34
    %vm36 = vcmask 7168
    %s37 = scalar_lea.vmem %s1, 5
    %38 = vst.msk [vmem:[%s37] ss:$8 sm:$0x3] %vm36, %v35
    %v39 = vld [vmem:[#allocation0] sm:$0x3]
    %40 = vrot.lane.b32.xlu0 %v39, 122
    %v41 = vpop.permute.xlu0 %40
    %vm42 = vcmask 7168
    %s43 = scalar_lea.vmem %s1, 6
    %44 = vst.msk [vmem:[%s43] ss:$8 sm:$0x3] %vm42, %v41
    %v45 = vld [vmem:[#allocation0] sm:$0x3]
    %46 = vrot.lane.b32.xlu0 %v45, 121
    %v47 = vpop.permute.xlu0 %46
    %vm48 = vcmask 7168
    %s49 = scalar_lea.vmem %s1, 7
    %50 = vst.msk [vmem:[%s49] ss:$8 sm:$0x3] %vm48, %v47

// kernel: conv_dw_forward.1
$region0: #{conv_dw_forward.1}
  #allocation0 [shape = 'u32[]', space=smem, size = 0x4, offset = 0x4, fixed_abs, tag = 'smem constant byte address 0x4 - core index']
  #allocation1 [shape = 'u32[144,128]{1,0:T(1,128)}', space=vmem, size = 0x12000, scoped, tag = 'internal scratch']
  #allocation2 [shape = 'f32[8,324]{1,0:T(8,128)}', space=vmem, size = 0x3000, scoped, tag = 'scratch operand']
  #allocation3 [shape = 'f32[8,256]{1,0:T(8,128)}', space=vmem, size = 0x2000, scoped, tag = 'scratch operand']
  %s0 = inlined_call_operand.vmem [shape: f32[8,256], index: 0, kind: input, shape index: {}]
  %s1 = inlined_call_operand.vmem [shape: f32[8,9], index: 1, kind: input, shape index: {}]
  %s2 = inlined_call_operand.vmem [shape: f32[8,1], index: 2, kind: input, shape index: {}]
  %s3 = inlined_call_operand.vmem [shape: f32[16,8], index: 3, kind: input, shape index: {}]
  %s4 = inlined_call_operand.vmem [shape: f32[16,1], index: 4, kind: input, shape index: {}]
  %s5 = inlined_call_operand.vmem [shape: f32[16,256], index: 5, kind: output, shape index: {}]
  %s6 = sld [smem:[#allocation0]]
  $region30: #{conv_dw_forward.1} parent=0
    _
  %s8 = ssub.s32 1, %s6
  %s9 = scalar_select 0, %s8, %s6
  // Predicated region
  $region2: #{conv_dw_forward.1} parent=0 // pred_check
    _
  $region3: #{conv_dw_forward.1} parent=0 // pred_check_branch
    %11 = sbr.rel (0) target = $region5
  $region4: #{conv_dw_forward.1} parent=0 // pred_region
    _
  $region5: #{conv_dw_forward.1} parent=0 // pred_fallthru
    _
  // Predicated region
  $region6: #{conv_dw_forward.1} parent=0 // pred_check
    _
  $region7: #{conv_dw_forward.1} parent=0 // pred_check_branch
    %13 = sbr.rel (0) target = $region9
  $region8: #{conv_dw_forward.1} parent=0 // pred_region
    _
  $region9: #{conv_dw_forward.1} parent=0 // pred_fallthru
    _
  // Predicated region
  $region10: #{conv_dw_forward.1} parent=0 // pred_check
    _
  $region11: #{conv_dw_forward.1} parent=0 // pred_check_branch
    %15 = sbr.rel (0) target = $region13
  $region12: #{conv_dw_forward.1} parent=0 // pred_region
    _
  $region13: #{conv_dw_forward.1} parent=0 // pred_fallthru
    _
  // Predicated region
  $region14: #{conv_dw_forward.1} parent=0 // pred_check
    _
  $region15: #{conv_dw_forward.1} parent=0 // pred_check_branch
    %17 = sbr.rel (0) target = $region17
  $region16: #{conv_dw_forward.1} parent=0 // pred_region
    _
  $region17: #{conv_dw_forward.1} parent=0 // pred_fallthru
    _
  // Predicated region
  $region18: #{conv_dw_forward.1} parent=0 // pred_check
    _
  $region19: #{conv_dw_forward.1} parent=0 // pred_check_branch
    %19 = sbr.rel (0) target = $region21
  $region20: #{conv_dw_forward.1} parent=0 // pred_region
    _
  $region21: #{conv_dw_forward.1} parent=0 // pred_fallthru
    _
  %20 = vst [vmem:[#allocation2] sm:$0xff] 0.0
  %21 = vst [vmem:[#allocation2 + $0x8] sm:$0xff] 0.0
  %vm22 = vcmask 556032
  %23 = vst.msk [vmem:[#allocation2 + $0x10] sm:$0xff] %vm22, 0.0
  %v24 = vld [vmem:[%s0] sm:$0xff]
  %v25 = vld [vmem:[%s0 + $0x8] sm:$0xff]
  %27 = vrot.lane.b32.xlu0 %v24, 19
  %v28 = vpop.permute.xlu0 %27
  %vm30 = vcmask 285848
  %31 = vst.msk [vmem:[#allocation2] sm:$0xff] %vm30, %v28
  %32 = vrot.lane.b32.xlu0 %v24, 21
  %v33 = vpop.permute.xlu0 %32
  %vm35 = vcmask 433448
  %36 = vst.msk [vmem:[#allocation2] sm:$0xff] %vm35, %v33
  %37 = vrot.lane.b32.xlu0 %v24, 23
  %v38 = vpop.permute.xlu0 %37
  %vm40 = vcmask 581048
  %41 = vst.msk [vmem:[#allocation2] sm:$0xff] %vm40, %v38
  %42 = vrot.lane.b32.xlu0 %v24, 25
  %v43 = vpop.permute.xlu0 %42
  %vm45 = vcmask 728648
  %46 = vst.msk [vmem:[#allocation2] sm:$0xff] %vm45, %v43
  %47 = vrot.lane.b32.xlu0 %v24, 27
  %v48 = vpop.permute.xlu0 %47
  %vm50 = vcmask 876248
  %51 = vst.msk [vmem:[#allocation2] sm:$0xff] %vm50, %v48
  %52 = vrot.lane.b32.xlu0 %v24, 29
  %v53 = vpop.permute.xlu0 %52
  %vm55 = vcmask 1023848
  %56 = vst.msk [vmem:[#allocation2] sm:$0xff] %vm55, %v53
  %57 = vrot.lane.b32.xlu0 %v24, 31
  %v58 = vpop.permute.xlu0 %57
  %vm60 = vcmask 1048568
  %61 = vst.msk [vmem:[#allocation2] sm:$0xff] %vm60, %v58
  %vm62 = vcmask 121856
  %63 = vst.msk [vmem:[#allocation2 + $0x8] sm:$0xff] %vm62, %v58
  %64 = vrot.lane.b32.xlu0 %v24, 33
  %v65 = vpop.permute.xlu0 %64
  %vm67 = vcmask 269448
  %68 = vst.msk [vmem:[#allocation2 + $0x8] sm:$0xff] %vm67, %v65
  %70 = vrot.lane.b32.xlu0 %v25, 35
  %v71 = vpop.permute.xlu0 %70
  %vm73 = vcmask 417048
  %74 = vst.msk [vmem:[#allocation2 + $0x8] sm:$0xff] %vm73, %v71
  %75 = vrot.lane.b32.xlu0 %v25, 37
  %v76 = vpop.permute.xlu0 %75
  %vm78 = vcmask 564648
  %79 = vst.msk [vmem:[#allocation2 + $0x8] sm:$0xff] %vm78, %v76
  %80 = vrot.lane.b32.xlu0 %v25, 39
  %v81 = vpop.permute.xlu0 %80
  %vm83 = vcmask 712248
  %84 = vst.msk [vmem:[#allocation2 + $0x8] sm:$0xff] %vm83, %v81
  %85 = vrot.lane.b32.xlu0 %v25, 41
  %v86 = vpop.permute.xlu0 %85
  %vm88 = vcmask 859848
  %89 = vst.msk [vmem:[#allocation2 + $0x8] sm:$0xff] %vm88, %v86
  %90 = vrot.lane.b32.xlu0 %v25, 43
  %v91 = vpop.permute.xlu0 %90
  %vm93 = vcmask 1007448
  %94 = vst.msk [vmem:[#allocation2 + $0x8] sm:$0xff] %vm93, %v91
  %95 = vrot.lane.b32.xlu0 %v25, 45
  %v96 = vpop.permute.xlu0 %95
  %vm98 = vcmask 1048552
  %99 = vst.msk [vmem:[#allocation2 + $0x8] sm:$0xff] %vm98, %v96
  %vm100 = vcmask 105472
  %101 = vst.msk [vmem:[#allocation2 + $0x10] sm:$0xff] %vm100, %v96
  %102 = vrot.lane.b32.xlu0 %v25, 47
  %v103 = vpop.permute.xlu0 %102
  %vm105 = vcmask 253048
  %106 = vst.msk [vmem:[#allocation2 + $0x10] sm:$0xff] %vm105, %v103
  %107 = vrot.lane.b32.xlu0 %v25, 49
  %v108 = vpop.permute.xlu0 %107
  %vm110 = vcmask 400648
  %111 = vst.msk [vmem:[#allocation2 + $0x10] sm:$0xff] %vm110, %v108
  %v112 = vld [vmem:[#allocation2] sm:$0xff]
  %v113 = vld [vmem:[#allocation2 + $0x8] sm:$0xff]
  %v114 = vld [vmem:[#allocation2 + $0x10] sm:$0xff]
  %v115 = vld [vmem:[%s1] sm:$0xff]
  %117 = vset.pattern.permute.xlu0 0
  %118 = vperm.xlu0 %117, %v115
  %v119 = vpop.permute.xlu0 %118
  %v121 = vmul.f32 %v112, %v119
  %v122 = vmul.f32 %v113, %v119
  %v123 = vmul.f32 %v114, %v119
  %124 = vset.pattern.permute.xlu0 1
  %125 = vperm.xlu0 %124, %v115
  %v126 = vpop.permute.xlu0 %125
  %v128 = vmul.f32 %v112, %v126
  %v129 = vmul.f32 %v113, %v126
  %v130 = vmul.f32 %v114, %v126
  %134 = vrot.lane.b32.xlu0 %v128, 127
  %v135 = vpop.permute.xlu0 %134
  %136 = vrot.lane.b32.xlu0 %v129, 127
  %v137 = vpop.permute.xlu0 %136
  %138 = vrot.lane.b32.xlu0 %v130, 127
  %v139 = vpop.permute.xlu0 %138
  %vm140 = vcmask 1039360
  %v141 = vsel %vm140, %v135, %v137
  %v142 = vsel %vm140, %v137, %v139
  %v146 = vadd.f32 %v121, %v141
  %v147 = vadd.f32 %v122, %v142
  %v148 = vadd.f32 %v123, %v139
  %149 = vset.pattern.permute.xlu0 2
  %150 = vperm.xlu0 %149, %v115
  %v151 = vpop.permute.xlu0 %150
  %v153 = vmul.f32 %v112, %v151
  %v154 = vmul.f32 %v113, %v151
  %v155 = vmul.f32 %v114, %v151
  %159 = vrot.lane.b32.xlu0 %v153, 126
  %v160 = vpop.permute.xlu0 %159
  %161 = vrot.lane.b32.xlu0 %v154, 126
  %v162 = vpop.permute.xlu0 %161
  %163 = vrot.lane.b32.xlu0 %v155, 126
  %v164 = vpop.permute.xlu0 %163
  %vm165 = vcmask 1031168
  %v166 = vsel %vm165, %v160, %v162
  %v167 = vsel %vm165, %v162, %v164
  %v171 = vadd.f32 %v146, %v166
  %v172 = vadd.f32 %v147, %v167
  %v173 = vadd.f32 %v148, %v164
  %174 = vset.pattern.permute.xlu0 3
  %175 = vperm.xlu0 %174, %v115
  %v176 = vpop.permute.xlu0 %175
  %v178 = vmul.f32 %v112, %v176
  %v179 = vmul.f32 %v113, %v176
  %v180 = vmul.f32 %v114, %v176
  %181 = vset.pattern.permute.xlu0 4
  %182 = vperm.xlu0 %181, %v115
  %v183 = vpop.permute.xlu0 %182
  %v185 = vmul.f32 %v112, %v183
  %v186 = vmul.f32 %v113, %v183
  %v187 = vmul.f32 %v114, %v183
  %191 = vrot.lane.b32.xlu0 %v185, 127
  %v192 = vpop.permute.xlu0 %191
  %193 = vrot.lane.b32.xlu0 %v186, 127
  %v194 = vpop.permute.xlu0 %193
  %195 = vrot.lane.b32.xlu0 %v187, 127
  %v196 = vpop.permute.xlu0 %195
  %v197 = vsel %vm140, %v192, %v194
  %v198 = vsel %vm140, %v194, %v196
  %v202 = vadd.f32 %v178, %v197
  %v203 = vadd.f32 %v179, %v198
  %v204 = vadd.f32 %v180, %v196
  %205 = vset.pattern.permute.xlu0 5
  %206 = vperm.xlu0 %205, %v115
  %v207 = vpop.permute.xlu0 %206
  %v209 = vmul.f32 %v112, %v207
  %v210 = vmul.f32 %v113, %v207
  %v211 = vmul.f32 %v114, %v207
  %215 = vrot.lane.b32.xlu0 %v209, 126
  %v216 = vpop.permute.xlu0 %215
  %217 = vrot.lane.b32.xlu0 %v210, 126
  %v218 = vpop.permute.xlu0 %217
  %219 = vrot.lane.b32.xlu0 %v211, 126
  %v220 = vpop.permute.xlu0 %219
  %v221 = vsel %vm165, %v216, %v218
  %v222 = vsel %vm165, %v218, %v220
  %v226 = vadd.f32 %v202, %v221
  %v227 = vadd.f32 %v203, %v222
  %v228 = vadd.f32 %v204, %v220
  %229 = vset.pattern.permute.xlu0 6
  %230 = vperm.xlu0 %229, %v115
  %v231 = vpop.permute.xlu0 %230
  %v233 = vmul.f32 %v112, %v231
  %v234 = vmul.f32 %v113, %v231
  %v235 = vmul.f32 %v114, %v231
  %236 = vset.pattern.permute.xlu0 7
  %237 = vperm.xlu0 %236, %v115
  %v238 = vpop.permute.xlu0 %237
  %v240 = vmul.f32 %v112, %v238
  %v241 = vmul.f32 %v113, %v238
  %v242 = vmul.f32 %v114, %v238
  %246 = vrot.lane.b32.xlu0 %v240, 127
  %v247 = vpop.permute.xlu0 %246
  %248 = vrot.lane.b32.xlu0 %v241, 127
  %v249 = vpop.permute.xlu0 %248
  %250 = vrot.lane.b32.xlu0 %v242, 127
  %v251 = vpop.permute.xlu0 %250
  %v252 = vsel %vm140, %v247, %v249
  %v253 = vsel %vm140, %v249, %v251
  %v257 = vadd.f32 %v233, %v252
  %v258 = vadd.f32 %v234, %v253
  %v259 = vadd.f32 %v235, %v251
  %260 = vset.pattern.permute.xlu0 8
  %261 = vperm.xlu0 %260, %v115
  %v262 = vpop.permute.xlu0 %261
  %v264 = vmul.f32 %v112, %v262
  %v265 = vmul.f32 %v113, %v262
  %v266 = vmul.f32 %v114, %v262
  %270 = vrot.lane.b32.xlu0 %v264, 126
  %v271 = vpop.permute.xlu0 %270
  %272 = vrot.lane.b32.xlu0 %v265, 126
  %v273 = vpop.permute.xlu0 %272
  %274 = vrot.lane.b32.xlu0 %v266, 126
  %v275 = vpop.permute.xlu0 %274
  %v276 = vsel %vm165, %v271, %v273
  %v277 = vsel %vm165, %v273, %v275
  %v281 = vadd.f32 %v257, %v276
  %v282 = vadd.f32 %v258, %v277
  %v283 = vadd.f32 %v259, %v275
  %287 = vrot.lane.b32.xlu0 %v226, 110
  %v288 = vpop.permute.xlu0 %287
  %289 = vrot.lane.b32.xlu0 %v227, 110
  %v290 = vpop.permute.xlu0 %289
  %291 = vrot.lane.b32.xlu0 %v228, 110
  %v292 = vpop.permute.xlu0 %291
  %vm293 = vcmask 900096
  %v294 = vsel %vm293, %v288, %v290
  %v295 = vsel %vm293, %v290, %v292
  %v299 = vadd.f32 %v171, %v294
  %v300 = vadd.f32 %v172, %v295
  %v301 = vadd.f32 %v173, %v292
  %305 = vrot.lane.b32.xlu0 %v281, 92
  %v306 = vpop.permute.xlu0 %305
  %307 = vrot.lane.b32.xlu0 %v282, 92
  %v308 = vpop.permute.xlu0 %307
  %309 = vrot.lane.b32.xlu0 %v283, 92
  %v310 = vpop.permute.xlu0 %309
  %vm311 = vcmask 752640
  %v312 = vsel %vm311, %v306, %v308
  %v313 = vsel %vm311, %v308, %v310
  %v317 = vadd.f32 %v299, %v312
  %v318 = vadd.f32 %v300, %v313
  %v319 = vadd.f32 %v301, %v310
  %vm320 = vcmask 130048
  %321 = vst.msk [vmem:[#allocation3] sm:$0xff] %vm320, %v317
  %323 = vrot.lane.b32.xlu0 %v317, 126
  %v324 = vpop.permute.xlu0 %323
  %vm326 = vcmask 261248
  %327 = vst.msk [vmem:[#allocation3] sm:$0xff] %vm326, %v324
  %328 = vrot.lane.b32.xlu0 %v317, 124
  %v329 = vpop.permute.xlu0 %328
  %vm331 = vcmask 392448
  %332 = vst.msk [vmem:[#allocation3] sm:$0xff] %vm331, %v329
  %333 = vrot.lane.b32.xlu0 %v317, 122
  %v334 = vpop.permute.xlu0 %333
  %vm336 = vcmask 523648
  %337 = vst.msk [vmem:[#allocation3] sm:$0xff] %vm336, %v334
  %338 = vrot.lane.b32.xlu0 %v317, 120
  %v339 = vpop.permute.xlu0 %338
  %vm341 = vcmask 654848
  %342 = vst.msk [vmem:[#allocation3] sm:$0xff] %vm341, %v339
  %343 = vrot.lane.b32.xlu0 %v317, 118
  %v344 = vpop.permute.xlu0 %343
  %vm346 = vcmask 786048
  %347 = vst.msk [vmem:[#allocation3] sm:$0xff] %vm346, %v344
  %348 = vrot.lane.b32.xlu0 %v317, 116
  %v349 = vpop.permute.xlu0 %348
  %vm351 = vcmask 917248
  %352 = vst.msk [vmem:[#allocation3] sm:$0xff] %vm351, %v349
  %354 = vrot.lane.b32.xlu0 %v317, 114
  %v355 = vpop.permute.xlu0 %354
  %356 = vrot.lane.b32.xlu0 %v318, 114
  %v357 = vpop.permute.xlu0 %356
  %vm358 = vcmask 932864
  %v359 = vsel %vm358, %v355, %v357
  %vm361 = vcmask 1048448
  %362 = vst.msk [vmem:[#allocation3] sm:$0xff] %vm361, %v359
  %363 = vrot.lane.b32.xlu0 %v318, 112
  %v364 = vpop.permute.xlu0 %363
  %366 = vst.msk [vmem:[#allocation3 + $0x8] sm:$0xff] %vm320, %v364
  %367 = vrot.lane.b32.xlu0 %v318, 110
  %v368 = vpop.permute.xlu0 %367
  %370 = vst.msk [vmem:[#allocation3 + $0x8] sm:$0xff] %vm326, %v368
  %371 = vrot.lane.b32.xlu0 %v318, 108
  %v372 = vpop.permute.xlu0 %371
  %374 = vst.msk [vmem:[#allocation3 + $0x8] sm:$0xff] %vm331, %v372
  %375 = vrot.lane.b32.xlu0 %v318, 106
  %v376 = vpop.permute.xlu0 %375
  %378 = vst.msk [vmem:[#allocation3 + $0x8] sm:$0xff] %vm336, %v376
  %379 = vrot.lane.b32.xlu0 %v318, 104
  %v380 = vpop.permute.xlu0 %379
  %382 = vst.msk [vmem:[#allocation3 + $0x8] sm:$0xff] %vm341, %v380
  %383 = vrot.lane.b32.xlu0 %v318, 102
  %v384 = vpop.permute.xlu0 %383
  %386 = vst.msk [vmem:[#allocation3 + $0x8] sm:$0xff] %vm346, %v384
  %388 = vrot.lane.b32.xlu0 %v318, 100
  %v389 = vpop.permute.xlu0 %388
  %390 = vrot.lane.b32.xlu0 %v319, 100
  %v391 = vpop.permute.xlu0 %390
  %vm392 = vcmask 818176
  %v393 = vsel %vm392, %v389, %v391
  %395 = vst.msk [vmem:[#allocation3 + $0x8] sm:$0xff] %vm351, %v393
  %396 = vrot.lane.b32.xlu0 %v319, 98
  %v397 = vpop.permute.xlu0 %396
  %399 = vst.msk [vmem:[#allocation3 + $0x8] sm:$0xff] %vm361, %v397
  %v400 = vld [vmem:[#allocation3] sm:$0xff]
  %v401 = vld [vmem:[#allocation3 + $0x8] sm:$0xff]
  %v402 = vld [vmem:[%s2] sm:$0xff]
  %404 = vset.pattern.permute.xlu0 0
  %405 = vperm.xlu0 %404, %v402
  %v406 = vpop.permute.xlu0 %405
  %v408 = vadd.f32 %v400, %v406
  %v409 = vadd.f32 %v401, %v406
  %vm410 = vcmp.gt.f32.partialorder %v408, 0.0
  %vm411 = vcmp.gt.f32.partialorder %v409, 0.0
  %v412 = vmul.f32 %v408, 0.01
  %v413 = vmul.f32 %v409, 0.01
  %v414 = vsel %vm410, %v408, %v412
  %v415 = vsel %vm411, %v409, %v413
  %v416 = vld [vmem:[%s3] sm:$0xff]
  %v417 = vld [vmem:[%s3 + $0x8] sm:$0xff]
  %v418 = vld [vmem:[%s4] sm:$0xff]
  %v419 = vld [vmem:[%s4 + $0x8] sm:$0xff]
  %421 = vset.pattern.permute.xlu0 0
  %422 = vperm.xlu0 %421, %v418
  %v423 = vpop.permute.xlu0 %422
  %426 = vset.pattern.permute.xlu0 0
  %427 = vperm.xlu0 %426, %v419
  %v428 = vpop.permute.xlu0 %427
  %vm430 = vcmask 64512
  %v432 = vsel %vm430, %v416, 0
  %v435 = vsel %vm430, %v417, 0
  %437 = vmatprep.subr.mxu0 %v415
  %438 = vmatpush1.msra.mxu0 %v414
  %439 = vmatprep.subr.mxu0 0.0
  %440 = vmatpush1.msra.mxu0 0.0
  %441 = vmatprep.subr.mxu0 0.0
  %442 = vmatpush1.msra.mxu0 0.0
  %443 = vmatprep.subr.mxu0 0.0
  %444 = vmatpush1.msra.mxu0 0.0
  %445 = vmatprep.subr.mxu0 0.0
  %446 = vmatpush1.msra.mxu0 0.0
  %447 = vmatprep.subr.mxu0 0.0
  %448 = vmatpush1.msra.mxu0 0.0
  %449 = vmatprep.subr.mxu0 0.0
  %450 = vmatpush1.msra.mxu0 0.0
  %451 = vmatprep.subr.mxu0 0.0
  %452 = vmatpush1.msra.mxu0 0.0
  %453 = vmatprep.subr.mxu0 0.0
  %454 = vmatpush1.msra.mxu0 0.0
  %455 = vmatprep.subr.mxu0 0.0
  %456 = vmatpush1.msra.mxu0 0.0
  %457 = vmatprep.subr.mxu0 0.0
  %458 = vmatpush1.msra.mxu0 0.0
  %459 = vmatprep.subr.mxu0 0.0
  %460 = vmatpush1.msra.mxu0 0.0
  %461 = vmatprep.subr.mxu0 0.0
  %462 = vmatpush1.msra.mxu0 0.0
  %463 = vmatprep.subr.mxu0 0.0
  %464 = vmatpush1.msra.mxu0 0.0
  %465 = vmatprep.subr.mxu0 0.0
  %466 = vmatpush1.msra.mxu0 0.0
  %467 = vmatprep.subr.mxu0 0.0
  %468 = vmatpush1.msra.mxu0 0.0
  %469 = vmatprep.subr.mxu0 0.0
  %470 = vmatpush1.msra.mxu0 0.0
  %471 = vmatprep.subr.mxu0 0.0
  %472 = vmatpush1.msra.mxu0 0.0
  %473 = vmatprep.subr.mxu0 0.0
  %474 = vmatpush1.msra.mxu0 0.0
  %475 = vmatprep.subr.mxu0 0.0
  %476 = vmatpush1.msra.mxu0 0.0
  %477 = vmatprep.subr.mxu0 0.0
  %478 = vmatpush1.msra.mxu0 0.0
  %479 = vmatprep.subr.mxu0 0.0
  %480 = vmatpush1.msra.mxu0 0.0
  %481 = vmatprep.subr.mxu0 0.0
  %482 = vmatpush1.msra.mxu0 0.0
  %483 = vmatprep.subr.mxu0 0.0
  %484 = vmatpush1.msra.mxu0 0.0
  %485 = vmatprep.subr.mxu0 0.0
  %486 = vmatpush1.msra.mxu0 0.0
  %487 = vmatprep.subr.mxu0 0.0
  %488 = vmatpush1.msra.mxu0 0.0
  %489 = vmatprep.subr.mxu0 0.0
  %490 = vmatpush1.msra.mxu0 0.0
  %491 = vmatprep.subr.mxu0 0.0
  %492 = vmatpush1.msra.mxu0 0.0
  %493 = vmatprep.subr.mxu0 0.0
  %494 = vmatpush1.msra.mxu0 0.0
  %495 = vmatprep.subr.mxu0 0.0
  %496 = vmatpush1.msra.mxu0 0.0
  %497 = vmatprep.subr.mxu0 0.0
  %498 = vmatpush1.msra.mxu0 0.0
  %499 = vmatprep.subr.mxu0 0.0
  %500 = vmatpush1.msra.mxu0 0.0
  %501 = vmatprep.mubr.f32.mxu0 0.0
  %502 = vmatmul.mubr.f32.gmra.mrb[0].mxu0 %v432
  %v503 = vpop.f32.mrb[0].mxu0
  %v504 = vadd.f32 %v423, %v503
  %v505 = vpop.f32.mrb[0].mxu0
  %v506 = vadd.f32 %v423, %v505
  %507 = vmatprep.mubr.f32.mxu0 0.0
  %508 = vmatmul.mubr.f32.gmra.mrb[0].mxu0 %v435
  %v509 = vpop.f32.mrb[0].mxu0
  %v510 = vadd.f32 %v428, %v509
  %v511 = vpop.f32.mrb[0].mxu0
  %v512 = vadd.f32 %v428, %v511
  %513 = vdwg.mxu0
  %vm514 = vcmp.gt.f32.partialorder %v504, 0.0
  %vm515 = vcmp.gt.f32.partialorder %v506, 0.0
  %vm516 = vcmp.gt.f32.partialorder %v510, 0.0
  %vm517 = vcmp.gt.f32.partialorder %v512, 0.0
  %v518 = vmul.f32 %v504, 0.1
  %v519 = vmul.f32 %v506, 0.1
  %v520 = vmul.f32 %v510, 0.1
  %v521 = vmul.f32 %v512, 0.1
  %v522 = vsel %vm514, %v504, %v518
  %v523 = vsel %vm515, %v506, %v519
  %v524 = vsel %vm516, %v510, %v520
  %v525 = vsel %vm517, %v512, %v521
  %526 = vst [vmem:[%s5] sm:$0xff] %v522
  %527 = vst [vmem:[%s5 + $0x8] sm:$0xff] %v523
  %528 = vst [vmem:[%s5 + $0x10] sm:$0xff] %v524
  %529 = vst [vmem:[%s5 + $0x18] sm:$0xff] %v525
  // Predicated region
  $region22: #{conv_dw_forward.1} parent=0 // pred_check
    _
  $region23: #{conv_dw_forward.1} parent=0 // pred_check_branch
    %531 = sbr.rel (0) target = $region25
  $region24: #{conv_dw_forward.1} parent=0 // pred_region
    _
  $region25: #{conv_dw_forward.1} parent=0 // pred_fallthru
    _
  // Predicated region
  $region26: #{conv_dw_forward.1} parent=0 // pred_check
    _
  $region27: #{conv_dw_forward.1} parent=0 // pred_check_branch
    %533 = sbr.rel (0) target = $region29
  $region28: #{conv_dw_forward.1} parent=0 // pred_region
    _
  $region29: #{conv_dw_forward.1} parent=0 // pred_fallthru
    _

</llo_original>
